<compile_context>
chip_gen: v7x
topology: tpu7x:2x2x1
jax: 0.10.0
libtpu: 0.0.40
codegen_flags: <defaults>
</compile_context>

<pallas_src>
import math

import numpy as np
import jax
import jax.numpy as jnp
from jax.experimental import pallas as pl
from jax.experimental.pallas import tpu as pltpu


_TARGET_TILE_BYTES = 2 * 1024 * 1024  # ~2 MiB per buffer: >=85% of HBM roofline,
                                      # fits v5e's 16 MiB scoped-VMEM default.


def _round_up(x: int, m: int) -> int:
    return ((x + m - 1) // m) * m


def _round_down(x: int, m: int) -> int:
    return (x // m) * m


def _build_pe(d_embedding: int, max_seq_len: int) -> np.ndarray:
    """Exactly reproduces the PyTorch __init__ loop, including its
    nonstandard 2*i / 2*(i+1) exponents (do NOT 'fix' to the canonical
    pairing).  Like the reference, it indexes pe[pos, i+1] and therefore
    requires an even d_embedding."""
    pe = np.zeros((max_seq_len, d_embedding), dtype=np.float32)
    for pos in range(max_seq_len):
        for i in range(0, d_embedding, 2):
            pe[pos, i] = math.sin(pos / 10000 ** (2 * i / d_embedding))
            pe[pos, i + 1] = math.cos(pos / 10000 ** (2 * (i + 1) / d_embedding))
    return pe


def _add_pe_kernel(x_ref, pe_ref, o_ref):
    # Path A: x_ref (TS, D), pe_ref (TS, D)          -> same-shape add.
    # Path B: x_ref (B, TL), pe_ref (1, TL)          -> broadcast over batch rows.
    o_ref[...] = (x_ref[...] + pe_ref[...]).astype(o_ref.dtype)


def position_encoder_forward(x: jax.Array, pe: jax.Array) -> jax.Array:
    """out = x + pe[:seq_len, :], broadcast over batch.  `pe` is the full
    (max_seq_len, D) buffer, already in the compute dtype (cast once at init)."""
    B, S, D = x.shape
    max_seq_len, d_pe = pe.shape
    if d_pe != D:
        raise ValueError(f"pe embedding dim {d_pe} != x embedding dim {D}")
    if S > max_seq_len:
        raise ValueError(f"seq_len {S} exceeds max_seq_len {max_seq_len}")
    itemsize = jnp.dtype(x.dtype).itemsize

    if D % 128 == 0:
        # --- Path A: lane-dense already; tile the sequence dimension. -------
        ts = min(_round_up(S, 8),
                 max(8, _round_down(_TARGET_TILE_BYTES // (D * itemsize), 8)))
        grid = (pl.cdiv(S, ts), B)  # B innermost -> pe DMA reused across batch.
        in_specs = [
            pl.BlockSpec((None, ts, D), lambda s, b: (b, s, 0)),   # x (batch squeezed)
            pl.BlockSpec((ts, D), lambda s, b: (s, 0)),            # pe windowed, no slice copy
        ]
        out_spec = pl.BlockSpec((None, ts, D), lambda s, b: (b, s, 0))
        out_shape = jax.ShapeDtypeStruct((B, S, D), x.dtype)
        args = (x, pe)
        dims = ("parallel", "parallel")
        needs_reshape = False
    else:
        # --- Path B: D < 128-aligned (demo D=32): flatten to (B, S*D) so the
        # output tile's last dim is a multiple of 128 (or the full extent). ---
        L = S * D
        x2 = x.reshape(B, L)                      # contiguous view, cheap
        pe_flat = pe[:S, :].reshape(1, L)         # small (S*D) copy; only on this path
        tl = min(L, max(128, _round_down(max(1, _TARGET_TILE_BYTES // (B * itemsize)), 128)))
        grid = (pl.cdiv(L, tl),)
        in_specs = [
            pl.BlockSpec((B, tl), lambda l: (0, l)),   # x  (full batch per tile)
            pl.BlockSpec((1, tl), lambda l: (0, l)),   # pe (broadcast in-kernel)
        ]
        out_spec = pl.BlockSpec((B, tl), lambda l: (0, l))
        out_shape = jax.ShapeDtypeStruct((B, L), x.dtype)
        args = (x2, pe_flat)
        dims = ("parallel",)
        needs_reshape = True

    out = pl.pallas_call(
        _add_pe_kernel,
        out_shape=out_shape,
        grid_spec=pltpu.PrefetchScalarGridSpec(
            num_scalar_prefetch=0,
            grid=grid,
            in_specs=in_specs,
            out_specs=out_spec,
        ),
        compiler_params=pltpu.CompilerParams(dimension_semantics=dims),
        input_output_aliases={0: 0},   # in-place on x's buffer
    )(*args)

    return out.reshape(B, S, D) if needs_reshape else out


if __name__ == "__main__":
    # Small shapes consistent with the module's forward: x is (batch, seq, d_embedding).
    batch, seq_len = 2, 8
    key = jax.random.PRNGKey(0)

    # --- Demo shape (D=32 -> flattened lane-dense path) ---------------------
    d_embedding, max_seq_len = 32, 16
    pe = jnp.asarray(_build_pe(d_embedding, max_seq_len))      # cast once at init
    x = jax.random.normal(key, (batch, seq_len, d_embedding), dtype=jnp.float32)

    ref = np.asarray(jax.block_until_ready(x + pe[:seq_len, :][None, :, :]))
    out = jax.block_until_ready(position_encoder_forward(x, pe))
    np.testing.assert_allclose(np.asarray(out), ref, rtol=1e-6, atol=1e-6)

    # --- 128-aligned shape (D=128 -> 3-D seq-tiled path) ---------------------
    d_embedding2 = 128
    pe2 = jnp.asarray(_build_pe(d_embedding2, max_seq_len))
    x2 = jax.random.normal(jax.random.PRNGKey(1),
                           (batch, seq_len, d_embedding2), dtype=jnp.float32)

    ref2 = np.asarray(jax.block_until_ready(x2 + pe2[:seq_len, :][None, :, :]))
    out2 = jax.block_until_ready(position_encoder_forward(x2, pe2))
    np.testing.assert_allclose(np.asarray(out2), ref2, rtol=1e-6, atol=1e-6)

    print("KERNEL_OK")
</pallas_src>

<mosaic_0001>
module attributes {stable_mosaic.version = 11 : i64} {
  func.func @_add_pe_kernel(%arg0: i32, %arg1: memref<2x256xf32, #tpu.memory_space<vmem>>, %arg2: memref<1x256xf32, #tpu.memory_space<vmem>>, %arg3: memref<2x256xf32, #tpu.memory_space<vmem>>) attributes {dimension_semantics = [#tpu.dimension_semantics<parallel>], iteration_bounds = array<i64: 1>, scalar_prefetch = 0 : i64, scratch_operands = 0 : i64, tpu.core_type = #tpu.core_type<tc>, window_params = [{transform_indices = @transform_0, window_bounds = array<i64: 2, 256>}, {transform_indices = @transform_1, window_bounds = array<i64: 1, 256>}, {transform_indices = @transform_2, window_bounds = array<i64: 2, 256>}]} {
    %c0 = arith.constant 0 : index
    %c0_0 = arith.constant 0 : index
    %0 = vector.load %arg1[%c0, %c0_0] : memref<2x256xf32, #tpu.memory_space<vmem>>, vector<2x256xf32>
    %c0_1 = arith.constant 0 : index
    %c0_2 = arith.constant 0 : index
    %1 = vector.load %arg2[%c0_1, %c0_2] : memref<1x256xf32, #tpu.memory_space<vmem>>, vector<1x256xf32>
    %2 = vector.broadcast %1 : vector<1x256xf32> to vector<2x256xf32>
    %3 = arith.addf %0, %2 : vector<2x256xf32>
    %c0_3 = arith.constant 0 : index
    %c0_4 = arith.constant 0 : index
    %4 = vector.load %arg3[%c0_3, %c0_4] : memref<2x256xf32, #tpu.memory_space<vmem>>, vector<2x256xf32>
    tpu.vector_store %arg3[%c0_3, %c0_4], %3 {strides = array<i32>} : memref<2x256xf32, #tpu.memory_space<vmem>>, vector<2x256xf32>,
    return
  }
  func.func @transform_0(%arg0: i32) -> (i32, i32) {
    %c0_i32 = arith.constant 0 : i32
    %c0_i32_0 = arith.constant 0 : i32
    return %c0_i32, %arg0 : i32, i32
  }
  func.func @transform_1(%arg0: i32) -> (i32, i32) {
    %c0_i32 = arith.constant 0 : i32
    %c0_i32_0 = arith.constant 0 : i32
    return %c0_i32, %arg0 : i32, i32
  }
  func.func @transform_2(%arg0: i32) -> (i32, i32) {
    %c0_i32 = arith.constant 0 : i32
    %c0_i32_0 = arith.constant 0 : i32
    return %c0_i32, %arg0 : i32, i32
  }
}

</mosaic_0001>

<llo_original>
// kernel: tpu_custom_call.1
$region0: #{tpu_custom_call.1}
  #allocation0 [shape = 'u32[]', space=smem, size = 0x4, offset = 0x4, fixed_abs, tag = 'smem constant byte address 0x4 - core index']
  #allocation1 [shape = 'u32[144,128]{1,0:T(1,128)}', space=vmem, size = 0x12000, scoped, tag = 'internal scratch']
  %s0 = inlined_call_operand.hbm [shape: f32[2,256], index: 0, kind: input, shape index: {}, may-alias: {0,2}]
  %s1 = inlined_call_operand.vmem [shape: f32[1,256], index: 1, kind: input, shape index: {}]
  %s2 = inlined_call_operand.hbm [shape: f32[2,256], index: 2, kind: output, shape index: {}, may-alias: {0,2}]
  %s3 = sld [smem:[#allocation0]]
  $region22: #{tpu_custom_call.1} parent=0
    _
  %s5 = ssub.s32 1, %s3
  %s6 = scalar_select 0, %s5, %s3
  $region1: #{tpu_custom_call.1} parent=0
    #allocation2 [shape = 'u8[2048]{0}', space=vmem, size = 0x800, scoped, tag = 'input window, operand 0, single buffered']
    #allocation3 [shape = 's32[1]{0}', space=sflag, size = 0x4, scoped, tag = 'scoped memory for tpu_custom_call.1']
    #allocation4 [shape = 's32[1]{0}', space=sflag, size = 0x4, scoped, tag = 'scoped memory for tpu_custom_call.1']
    #allocation5 [shape = 'u8[2048]{0}', space=vmem, size = 0x800, scoped, tag = 'output window, operand 0, single buffered']
    %7 = vsyncpa [#allocation3], 0
    %8 = vsyncpa [#allocation4], 0
    // Predicated region
    $region2: #{tpu_custom_call.1} parent=1 // pred_check
      _
    $region3: #{tpu_custom_call.1} parent=1 // pred_check_branch
      %10 = sbr.rel (0) target = $region5
    $region4: #{tpu_custom_call.1} parent=1 // pred_region
      %s12 = ssub.s32 64, 64
      %13 = vsyncadd [#allocation3], %s12
      %s15 = sshll.u32 [#allocation2], 4
      %s16 = int_to_ptr.vmem [resolvable:$true] %s15
      %18 = dma.hbm_to_vmem [thread:$0]  %s0, 64, %s16, [#allocation3]
    $region5: #{tpu_custom_call.1} parent=1 // pred_fallthru
      _
    // Predicated region
    $region6: #{tpu_custom_call.1} parent=1 // pred_check
      _
    $region7: #{tpu_custom_call.1} parent=1 // pred_check_branch
      %20 = sbr.rel (0) target = $region9
    $region8: #{tpu_custom_call.1} parent=1 // pred_region
      _
    $region9: #{tpu_custom_call.1} parent=1 // pred_fallthru
      _
    // Predicated region
    $region10: #{tpu_custom_call.1} parent=1 // pred_check
      _
    $region11: #{tpu_custom_call.1} parent=1 // pred_check_branch
      %22 = sbr.rel (0) target = $region13
    $region12: #{tpu_custom_call.1} parent=1 // pred_region
      %23 = dma.done [#allocation3], 64
    $region13: #{tpu_custom_call.1} parent=1 // pred_fallthru
      _
    %v24 = vld [vmem:[#allocation2] sm:$0xf]
    %v25 = vld [vmem:[%s1] sm:$0x3]
    %v27 = vlaneseq
    %v28 = vshrl.u32 %v27, 7
    %v29 = vsub.s32 0, %v28
    %v30 = vrot.slane %v25, %v29
    %v31 = vlaneseq
    %v32 = vshrl.u32 %v31, 7
    %v33 = vsub.s32 1, %v32
    %v34 = vrot.slane %v25, %v33
    %v35 = vcombine.low %v30, %v34
    %v37 = vunpack.c.l.s4 1983009808
    %v38 = vunpack.c.0.s8 %v37
    %v39 = vlaneseq
    %v40 = vshrl.u32 %v39, 7
    %v41 = vsub.s32 %v38, %v40
    %v42 = vrot.slane %v35, %v41
    %v44 = vadd.f32 %v24, %v42
    %45 = vst [vmem:[#allocation5] sm:$0xf] %v44
    // Predicated region
    $region14: #{tpu_custom_call.1} parent=1 // pred_check
      _
    $region15: #{tpu_custom_call.1} parent=1 // pred_check_branch
      %47 = sbr.rel (0) target = $region17
    $region16: #{tpu_custom_call.1} parent=1 // pred_region
      %s49 = ssub.s32 64, 64
      %50 = vsyncadd [#allocation4], %s49
      %s52 = sshll.u32 [#allocation5], 4
      %s53 = int_to_ptr.vmem [resolvable:$true] %s52
      %55 = dma.vmem_to_hbm [thread:$0]  %s53, 64, %s2, [#allocation4]
    $region17: #{tpu_custom_call.1} parent=1 // pred_fallthru
      _
    // Predicated region
    $region18: #{tpu_custom_call.1} parent=1 // pred_check
      _
    $region19: #{tpu_custom_call.1} parent=1 // pred_check_branch
      %57 = sbr.rel (0) target = $region21
    $region20: #{tpu_custom_call.1} parent=1 // pred_region
      %58 = dma.done [#allocation4], 64
    $region21: #{tpu_custom_call.1} parent=1 // pred_fallthru
      _
    %59 = vsyncpa [#allocation3], 1
    %60 = vsyncpa [#allocation4], 1

</llo_original>
